<compile_context>
chip_gen: v7x
topology: tpu7x:2x2x1
jax: 0.10.0
libtpu: 0.0.40
codegen_flags: <defaults>
</compile_context>

<pallas_src>
import jax
import jax.numpy as jnp
from jax.experimental import pallas as pl
from jax.experimental.pallas import tpu as pltpu


_LANE = 128
_MAX_COLS = 4096                       # lane-dense column cap (multiple of 128)
_LARGE_BYTES = 4 * 1024 * 1024         # "large array" threshold for row splitting
_MIN_ROW_STEPS = 4                     # >=4 row blocks on large arrays (v7x megacore)
_VMEM_SLACK = 2 * 1024 * 1024


def _swish_kernel(x_ref, o_ref):
    # SiLU / Swish: x * sigmoid(x), computed in f32 then cast back once.
    xf = x_ref[...].astype(jnp.float32)
    o_ref[...] = (xf * jax.nn.sigmoid(xf)).astype(o_ref.dtype)


def _vmem_capacity_bytes() -> int:
    """Physical VMEM per TensorCore; conservative (v7x-sized) fallback."""
    try:
        cap = getattr(pltpu.get_tpu_info(), "vmem_capacity_bytes", None)
        if cap:
            return int(cap)
    except Exception:
        pass
    return 64 * 1024 * 1024


def _pick_2d_layout(shape):
    """Pick a (rows, cols) 2-D view of the flattened array.

    Prefers a lane-dense view (cols a multiple of 128, up to _MAX_COLS) when
    the total size allows; otherwise keeps the natural last dim as the
    (full-extent) lane axis, which is always a legal BlockSpec column.
    """
    n = 1
    for d in shape:
        n *= d
    if n % _LANE == 0:
        m_total = n // _LANE
        candidates = [_LANE * m for m in range(1, _MAX_COLS // _LANE + 1)
                      if m_total % m == 0]
        # Prefer the widest lane-dense column that still leaves >= 8 rows.
        good = [c for c in candidates if n // c >= 8]
        cols = max(good) if good else max(candidates)
        return n // cols, cols
    if len(shape) >= 2:
        return n // shape[-1], shape[-1]
    return 1, n


def swish(x: jax.Array, *, donate_input: bool = False) -> jax.Array:
    """Applies SiLU elementwise to `x` of any shape via a Pallas TPU kernel.

    Set donate_input=True (and donate the buffer at the jit boundary) to reuse
    the input HBM allocation for the output.
    """
    orig_shape = x.shape
    if x.size == 0:
        return x

    rows, cols = _pick_2d_layout(orig_shape)
    x2 = x.reshape(rows, cols)
    itemsize = jnp.dtype(x.dtype).itemsize

    # ---- generation-aware budgets ------------------------------------------
    vmem_cap = _vmem_capacity_bytes()
    if vmem_cap <= 64 * 1024 * 1024:          # v7x-class: 64 MiB VMEM / TC
        target_block_bytes = 6 * 1024 * 1024
        vmem_hard_cap = 48 * 1024 * 1024      # keep clear of the 64 MiB ceiling
    else:                                     # v5e / v6e: 128 MiB VMEM
        target_block_bytes = 8 * 1024 * 1024
        vmem_hard_cap = 64 * 1024 * 1024

    # ---- column block --------------------------------------------------------
    block_cols = _MAX_COLS if cols > _MAX_COLS else cols
    padded_cols = ((block_cols + _LANE - 1) // _LANE) * _LANE
    grid_cols = pl.cdiv(cols, block_cols)

    # ---- row block -----------------------------------------------------------
    # Native sublane packing multiple: 8 (f32), 16 (bf16/f16), 32 (int8/fp8).
    sub = max(8, (8 * 4) // itemsize)

    if rows <= sub:
        block_rows = rows                      # full extent: always legal
    else:
        rb = target_block_bytes // max(padded_cols * itemsize, 1)
        br = min(rows, max(sub, rb))
        # Large arrays: keep >= _MIN_ROW_STEPS row blocks so v7x's two
        # TensorCores both get sharded work (no effect on single-TC v5e/v6e).
        if grid_cols == 1 and rows * padded_cols * itemsize >= _LARGE_BYTES:
            cap = pl.cdiv(rows, _MIN_ROW_STEPS)
            cap = max(sub, (cap // sub) * sub)
            br = min(br, cap)
        br = max(sub, (br // sub) * sub)
        block_rows = rows if br >= rows else br

    grid = (pl.cdiv(rows, block_rows), grid_cols)

    # ---- VMEM limit from the actual pipelined footprint ----------------------
    block_bytes = block_rows * padded_cols * itemsize
    vmem_limit = 4 * block_bytes + _VMEM_SLACK        # (in + out) x double-buffer
    vmem_limit = max(16 * 1024 * 1024, min(vmem_limit, vmem_hard_cap))

    # Advisory cost: pure HBM-streaming op (1 mul + ~4 VPU ops + 1 exp / elem).
    n_elems = rows * cols
    cost = pl.CostEstimate(flops=5 * n_elems,
                           transcendentals=n_elems,
                           bytes_accessed=2 * n_elems * itemsize)

    out = pl.pallas_call(
        _swish_kernel,
        out_shape=jax.ShapeDtypeStruct((rows, cols), x.dtype),
        grid_spec=pltpu.PrefetchScalarGridSpec(
            num_scalar_prefetch=0,
            grid=grid,
            in_specs=[pl.BlockSpec((block_rows, block_cols),
                                   lambda i, j: (i, j))],
            out_specs=pl.BlockSpec((block_rows, block_cols),
                                   lambda i, j: (i, j)),
        ),
        compiler_params=pltpu.CompilerParams(
            dimension_semantics=("parallel", "parallel"),
            vmem_limit_bytes=int(vmem_limit),
        ),
        cost_estimate=cost,
        input_output_aliases=({0: 0} if donate_input else {}),
    )(x2)

    return out.reshape(orig_shape)


def swish_reference(x: jax.Array) -> jax.Array:
    # Same definition as the kernel: compute in f32, cast once at the end.
    xf = x.astype(jnp.float32)
    return (xf * jax.nn.sigmoid(xf)).astype(x.dtype)


if __name__ == "__main__":
    key = jax.random.PRNGKey(0)

    # Shapes consistent with Conformer usage: (batch, seq, hidden)
    batch, seq, hidden = 2, 8, 32
    x_small = jax.random.normal(key, (batch, seq, hidden), dtype=jnp.float32)
    y_small = swish(x_small)
    jax.block_until_ready(y_small)
    y_small_ref = swish_reference(x_small)
    assert y_small.shape == x_small.shape and y_small.dtype == x_small.dtype
    assert jnp.allclose(y_small, y_small_ref, atol=1e-6, rtol=1e-6)

    # A larger activation that exercises the multi-block / multi-row-step path.
    x_big = jax.random.normal(key, (8, 512, 512), dtype=jnp.float32)
    y_big = swish(x_big)
    jax.block_until_ready(y_big)
    y_big_ref = swish_reference(x_big)
    assert y_big.shape == x_big.shape and y_big.dtype == x_big.dtype
    assert jnp.allclose(y_big, y_big_ref, atol=1e-6, rtol=1e-6)

    print("KERNEL_OK")
</pallas_src>

<mosaic_0001>
module attributes {stable_mosaic.version = 11 : i64} {
  func.func @_swish_kernel(%arg0: i32, %arg1: i32, %arg2: memref<1x512xf32, #tpu.memory_space<vmem>>, %arg3: memref<1x512xf32, #tpu.memory_space<vmem>>) attributes {dimension_semantics = [#tpu.dimension_semantics<parallel>, #tpu.dimension_semantics<parallel>], iteration_bounds = array<i64: 1, 1>, scalar_prefetch = 0 : i64, scratch_operands = 0 : i64, tpu.core_type = #tpu.core_type<tc>, window_params = [{transform_indices = @transform_0, window_bounds = array<i64: 1, 512>}, {transform_indices = @transform_1, window_bounds = array<i64: 1, 512>}]} {
    %c0 = arith.constant 0 : index
    %c0_0 = arith.constant 0 : index
    %0 = vector.load %arg2[%c0, %c0_0] : memref<1x512xf32, #tpu.memory_space<vmem>>, vector<1x512xf32>
    %1 = arith.negf %0 : vector<1x512xf32>
    %2 = math.exp %1 : vector<1x512xf32>
    %cst = arith.constant 1.000000e+00 : f32
    %3 = vector.broadcast %cst : f32 to vector<1x512xf32>
    %4 = arith.addf %3, %2 : vector<1x512xf32>
    %5 = arith.divf %3, %4 : vector<1x512xf32>
    %6 = arith.mulf %0, %5 : vector<1x512xf32>
    %c0_1 = arith.constant 0 : index
    %c0_2 = arith.constant 0 : index
    %7 = vector.load %arg3[%c0_1, %c0_2] : memref<1x512xf32, #tpu.memory_space<vmem>>, vector<1x512xf32>
    tpu.vector_store %arg3[%c0_1, %c0_2], %6 {strides = array<i32>} : memref<1x512xf32, #tpu.memory_space<vmem>>, vector<1x512xf32>,
    return
  }
  func.func @transform_0(%arg0: i32, %arg1: i32) -> (i32, i32) {
    %c0_i32 = arith.constant 0 : i32
    return %arg0, %arg1 : i32, i32
  }
  func.func @transform_1(%arg0: i32, %arg1: i32) -> (i32, i32) {
    %c0_i32 = arith.constant 0 : i32
    return %arg0, %arg1 : i32, i32
  }
}

</mosaic_0001>

<llo_original>
// kernel: tpu_custom_call.1
$region0: #{tpu_custom_call.1}
  #allocation0 [shape = 'u32[]', space=smem, size = 0x4, offset = 0x4, fixed_abs, tag = 'smem constant byte address 0x4 - core index']
  #allocation1 [shape = 'u32[144,128]{1,0:T(1,128)}', space=vmem, size = 0x12000, scoped, tag = 'internal scratch']
  %s0 = inlined_call_operand.hbm [shape: f32[1,512], index: 0, kind: input, shape index: {}]
  %s1 = inlined_call_operand.hbm [shape: f32[1,512], index: 1, kind: output, shape index: {}]
  %s2 = sld [smem:[#allocation0]]
  $region18: #{tpu_custom_call.1} parent=0
    _
  %s4 = ssub.s32 1, %s2
  %s5 = scalar_select 0, %s4, %s2
  $region1: #{tpu_custom_call.1} parent=0
    #allocation2 [shape = 'u8[2048]{0}', space=vmem, size = 0x800, scoped, tag = 'input window, operand 0, single buffered']
    #allocation3 [shape = 's32[1]{0}', space=sflag, size = 0x4, scoped, tag = 'scoped memory for tpu_custom_call.1']
    #allocation4 [shape = 's32[1]{0}', space=sflag, size = 0x4, scoped, tag = 'scoped memory for tpu_custom_call.1']
    #allocation5 [shape = 'u8[2048]{0}', space=vmem, size = 0x800, scoped, tag = 'output window, operand 0, single buffered']
    %6 = vsyncpa [#allocation3], 0
    %7 = vsyncpa [#allocation4], 0
    // Predicated region
    $region2: #{tpu_custom_call.1} parent=1 // pred_check
      _
    $region3: #{tpu_custom_call.1} parent=1 // pred_check_branch
      %9 = sbr.rel (0) target = $region5
    $region4: #{tpu_custom_call.1} parent=1 // pred_region
      %s11 = ssub.s32 64, 64
      %12 = vsyncadd [#allocation3], %s11
      %s14 = sshll.u32 [#allocation2], 4
      %s15 = int_to_ptr.vmem [resolvable:$true] %s14
      %17 = dma.hbm_to_vmem [thread:$0]  %s0, 64, %s15, [#allocation3]
    $region5: #{tpu_custom_call.1} parent=1 // pred_fallthru
      _
    // Predicated region
    $region6: #{tpu_custom_call.1} parent=1 // pred_check
      _
    $region7: #{tpu_custom_call.1} parent=1 // pred_check_branch
      %19 = sbr.rel (0) target = $region9
    $region8: #{tpu_custom_call.1} parent=1 // pred_region
      %20 = dma.done [#allocation3], 64
    $region9: #{tpu_custom_call.1} parent=1 // pred_fallthru
      _
    %v21 = vld [vmem:[#allocation2] sm:$0xf]
    %v22 = vxor.u32 %v21, 2147483648
    %v23 = vmul.f32 %v22, 1.442695
    %v24 = vpow.pop %v23
    %v25 = vadd.f32 %v24, 1.0
    %v26 = vrcp.pop %v25
    %v27 = vmul.f32 1.0, %v26
    %v28 = vmul.f32 %v21, %v27
    %v29 = vlaneseq
    %vm30 = vcmp.ge.s32.totalorder %v29, 0
    %vm31 = vcmp.lt.s32.totalorder %v29, 512
    %vm32 = vmand %vm30, %vm31
    %33 = vst.msk [vmem:[#allocation5] sm:$0xf] %vm32, %v28
    // Predicated region
    $region10: #{tpu_custom_call.1} parent=1 // pred_check
      _
    $region11: #{tpu_custom_call.1} parent=1 // pred_check_branch
      %35 = sbr.rel (0) target = $region13
    $region12: #{tpu_custom_call.1} parent=1 // pred_region
      %s37 = ssub.s32 64, 64
      %38 = vsyncadd [#allocation4], %s37
      %s40 = sshll.u32 [#allocation5], 4
      %s41 = int_to_ptr.vmem [resolvable:$true] %s40
      %43 = dma.vmem_to_hbm [thread:$0]  %s41, 64, %s1, [#allocation4]
    $region13: #{tpu_custom_call.1} parent=1 // pred_fallthru
      _
    // Predicated region
    $region14: #{tpu_custom_call.1} parent=1 // pred_check
      _
    $region15: #{tpu_custom_call.1} parent=1 // pred_check_branch
      %45 = sbr.rel (0) target = $region17
    $region16: #{tpu_custom_call.1} parent=1 // pred_region
      %46 = dma.done [#allocation4], 64
    $region17: #{tpu_custom_call.1} parent=1 // pred_fallthru
      _
    %47 = vsyncpa [#allocation3], 1
    %48 = vsyncpa [#allocation4], 1

</llo_original>
